<compile_context>
chip_gen: v7x
topology: tpu7x:2x2x1
jax: 0.10.0
libtpu: 0.0.40
codegen_flags: <defaults>
</compile_context>

<pallas_src>
import jax
import jax.numpy as jnp
from jax import lax
from jax.experimental import pallas as pl
from jax.experimental.pallas import tpu as pltpu

# ---- problem sizes (small, synthetic) ----
NUM_VIEWS = 2
N_NODES   = 16
IN_DIM    = 8
OUT_DIM   = 8
NUM_HEADS = 2
HID       = NUM_HEADS * OUT_DIM          # flattened per-view output width (16)
VH        = NUM_VIEWS * NUM_HEADS        # total (view, head) pairs (4)
V_HID     = NUM_VIEWS * HID              # fused feature width (32)
SEG       = VH * N_NODES                 # packed lane width (64)
NEG_SLOPE = 0.2                          # DGL GATConv default leaky_relu slope
NEG_BIG   = -1e30                        # additive mask for non-edges

# ---- packed-parameter row layout (sections 8-row aligned, 128 lanes wide) ----
R_WBIG  = 0      # (IN_DIM, V_HID + SEG)  fused projection + expanded er weights
R_WLT   = 8      # (VH, IN_DIM)           folded "left" attention weights
R_SSEG  = 16     # (VH, SEG)              segment-broadcast / segment-sum ones
R_REPN  = 24     # (N_NODES, SEG)         tiled identity (el lane scatter)
R_DUP   = 40     # (OUT_DIM, HID)         [I | I] column duplicator
R_CMASK = 48     # (VH*N_NODES, HID)      block-diagonal column mask
R_BMEAN = 112    # (1, HID)               mean-over-views bias
PARAM_ROWS  = 120
PARAM_LANES = 128


def _rgat_kernel(x_ref, p_ref, mbias_ref, out_ref):
    x = x_ref[...]                                                      # (N, IN)

    # static slices of the packed parameter operand (free ref views)
    w_big  = p_ref[R_WBIG:R_WBIG + IN_DIM, 0:V_HID + SEG]               # (IN, 96)
    w_lT   = p_ref[R_WLT:R_WLT + VH, 0:IN_DIM]                          # (VH, IN)
    s_seg  = p_ref[R_SSEG:R_SSEG + VH, 0:SEG]                           # (VH, SEG)
    rep_n  = p_ref[R_REPN:R_REPN + N_NODES, 0:SEG]                      # (N, SEG)
    dup    = p_ref[R_DUP:R_DUP + OUT_DIM, 0:HID]                        # (OUT, HID)
    cmask  = p_ref[R_CMASK:R_CMASK + VH * N_NODES, 0:HID]               # (VH*N, HID)
    b_mean = p_ref[R_BMEAN:R_BMEAN + 1, 0:HID]                          # (1, HID)

    # ---- single fused projection push: per-view features (already scaled by
    #      1/V) and er logits pre-broadcast to the packed lane layout
    proj = jnp.dot(x, w_big, preferred_element_type=jnp.float32)        # (N, 96)
    h_all  = proj[:, :V_HID]                                            # (N, V*HID)
    er_exp = proj[:, V_HID:]                                            # (N, SEG)

    # ---- el logits: one row per (head, view) pair, scattered into the packed
    #      lane layout with a tiny MXU push + mask + 4-row sublane reduce
    el_row = lax.dot_general(w_lT, x,
                             dimension_numbers=(((1,), (1,)), ((), ())),
                             preferred_element_type=jnp.float32)        # (VH, N)
    el_flat = jnp.sum(
        jnp.dot(el_row, rep_n, preferred_element_type=jnp.float32) * s_seg,
        axis=0, keepdims=True)                                          # (1, SEG)

    # ---- packed attention logits for all (view, head) pairs
    e_all = er_exp + el_flat                                            # (N, SEG)
    e_all = jnp.maximum(e_all, NEG_SLOPE * e_all)                       # leaky_relu
    e_all = e_all + mbias_ref[...]                                      # additive -1e30 mask

    # Global row max >= every per-segment max (self-loops keep it finite), so a
    # single packed subtraction stabilizes every segment's softmax; masked
    # lanes underflow to exactly 0 so no post-exp select is needed.
    m = jnp.max(e_all, axis=1, keepdims=True)                           # (N, 1)
    p_all = jnp.exp(e_all - m)                                          # (N, SEG)

    # Per-segment softmax denominators via one MXU contraction; reciprocal on
    # the EUP + one Newton step, done once on the packed (N, VH) tensor.
    denom = lax.dot_general(p_all, s_seg,
                            dimension_numbers=(((1,), (1,)), ((), ())),
                            preferred_element_type=jnp.float32)         # (N, VH)
    denom = jnp.maximum(denom, 1e-20)
    r = pl.reciprocal(denom, approx=True)
    r = r * (2.0 - denom * r)
    alpha = p_all * jnp.dot(r, s_seg, preferred_element_type=jnp.float32)  # (N, SEG)

    # ---- block-diagonal feature matrix: rows (h*V+v)*N + src, cols h*OUT + k
    #      (sublane-aligned concat + duplicate/mask; no unaligned lane concats)
    feat = jnp.concatenate(
        [h_all[:, v * HID + h * OUT_DIM: v * HID + (h + 1) * OUT_DIM]
         for h in range(NUM_HEADS) for v in range(NUM_VIEWS)],
        axis=0)                                                          # (VH*N, OUT)
    hh = jnp.dot(feat, dup, preferred_element_type=jnp.float32) * cmask  # (VH*N, HID)

    # ---- one aggregation push over all (view, head) pairs + single store
    out_ref[...] = (jnp.dot(alpha, hh, preferred_element_type=jnp.float32)
                    + b_mean)


@jax.jit
def rgat_forward(adj, x, W, attn_l, attn_r, bias):
    """adj: (V,N,N) float/bool, x: (N,IN), W: (V,IN,HID), attn_*: (V,H,OUT), bias: (V,1,HID)."""
    V, H, N, IN, OUT = NUM_VIEWS, NUM_HEADS, N_NODES, IN_DIM, OUT_DIM

    # ---- one-time parameter folding (weight plumbing, no data compute) ------
    W4 = W.reshape(V, IN, H, OUT)
    w_fused = jnp.transpose(W, (1, 0, 2)).reshape(IN, V_HID)             # (IN, V*HID)
    w_feat = w_fused * (1.0 / V)                                         # fold mean-over-views
    # folded attention projections, (head, view)-major: idx = h*V + v
    w_r = jnp.einsum('vihk,vhk->ihv', W4, attn_r).reshape(IN, VH)        # (IN, VH)
    w_lT = jnp.einsum('vihk,vhk->hvi', W4, attn_l).reshape(VH, IN)       # (VH, IN)
    w_er_exp = jnp.repeat(w_r, N, axis=1)                                # (IN, SEG)
    w_big = jnp.concatenate([w_feat, w_er_exp], axis=1)                  # (IN, V_HID+SEG)

    s_seg = jnp.repeat(jnp.eye(VH, dtype=jnp.float32), N, axis=1)        # (VH, SEG)
    rep_n = jnp.tile(jnp.eye(N, dtype=jnp.float32), (1, VH))             # (N, SEG)
    dup = jnp.tile(jnp.eye(OUT, dtype=jnp.float32), (1, H))              # (OUT, HID)
    row_h = (jnp.arange(VH * N) // N) // V                               # head of block row
    col_h = jnp.arange(HID) // OUT                                       # head of column
    cmask = (row_h[:, None] == col_h[None, :]).astype(jnp.float32)       # (VH*N, HID)
    b_mean = jnp.mean(bias, axis=0).reshape(1, HID)                      # (1, HID)

    params = jnp.zeros((PARAM_ROWS, PARAM_LANES), jnp.float32)
    params = params.at[R_WBIG:R_WBIG + IN, 0:V_HID + SEG].set(w_big)
    params = params.at[R_WLT:R_WLT + VH, 0:IN].set(w_lT)
    params = params.at[R_SSEG:R_SSEG + VH, 0:SEG].set(s_seg)
    params = params.at[R_REPN:R_REPN + N, 0:SEG].set(rep_n)
    params = params.at[R_DUP:R_DUP + OUT, 0:HID].set(dup)
    params = params.at[R_CMASK:R_CMASK + VH * N, 0:HID].set(cmask)
    params = params.at[R_BMEAN:R_BMEAN + 1, 0:HID].set(b_mean)

    # additive edge-mask bias, packed (dst, idx*N + src) with idx = h*V + v
    mb = jnp.where(adj > 0, 0.0, NEG_BIG).astype(jnp.float32)            # (V, N, N)
    mbias = jnp.concatenate([mb[idx % V] for idx in range(VH)], axis=1)  # (N, SEG)

    return pl.pallas_call(
        _rgat_kernel,
        out_shape=jax.ShapeDtypeStruct((N, HID), jnp.float32),
        in_specs=[pl.BlockSpec(memory_space=pltpu.MemorySpace.VMEM)
                  for _ in range(3)],
        out_specs=pl.BlockSpec(memory_space=pltpu.MemorySpace.VMEM),
    )(x, params, mbias)


def rgat_reference(adj, x, W, attn_l, attn_r, bias):
    """Pure-JAX reference mirroring DGL GATConv + RGATLayer mean over views."""
    outs = []
    for v in range(adj.shape[0]):
        h = x @ W[v]                                    # (N, H*out)
        h3 = h.reshape(N_NODES, NUM_HEADS, OUT_DIM)
        el = (h3 * attn_l[v][None]).sum(-1)             # (N, H)
        er = (h3 * attn_r[v][None]).sum(-1)             # (N, H)
        e = er[:, None, :] + el[None, :, :]             # (dst, src, H)
        e = jnp.where(e > 0, e, NEG_SLOPE * e)
        mask = (adj[v] > 0)[:, :, None]
        e = jnp.where(mask, e, -jnp.inf)
        alpha = jax.nn.softmax(e, axis=1)
        alpha = jnp.where(mask, alpha, 0.0)
        out = jnp.einsum("dsh,shf->dhf", alpha, h3)     # (N, H, out)
        out = out.reshape(N_NODES, HID) + bias[v].reshape(-1)
        outs.append(out)
    return jnp.stack(outs).mean(0)


if __name__ == "__main__":
    key = jax.random.PRNGKey(0)
    k_x, k_adj, k_w, k_al, k_ar, k_b = jax.random.split(key, 6)

    x = jax.random.normal(k_x, (N_NODES, IN_DIM), dtype=jnp.float32)

    # random adjacency per view + guaranteed self-loops (no empty softmax rows)
    adj = jax.random.bernoulli(k_adj, 0.3, (NUM_VIEWS, N_NODES, N_NODES))
    adj = jnp.maximum(adj.astype(jnp.float32),
                      jnp.eye(N_NODES, dtype=jnp.float32)[None])

    W      = 0.3 * jax.random.normal(k_w,  (NUM_VIEWS, IN_DIM, HID), dtype=jnp.float32)
    attn_l = 0.3 * jax.random.normal(k_al, (NUM_VIEWS, NUM_HEADS, OUT_DIM), dtype=jnp.float32)
    attn_r = 0.3 * jax.random.normal(k_ar, (NUM_VIEWS, NUM_HEADS, OUT_DIM), dtype=jnp.float32)
    bias   = 0.1 * jax.random.normal(k_b,  (NUM_VIEWS, 1, HID), dtype=jnp.float32)

    out = rgat_forward(adj, x, W, attn_l, attn_r, bias)
    out = jax.block_until_ready(out)

    ref = rgat_reference(adj, x, W, attn_l, attn_r, bias)
    assert out.shape == (N_NODES, HID)
    assert jnp.allclose(out, ref, atol=2e-5, rtol=1e-5), "mismatch vs reference"

    print("KERNEL_OK")
</pallas_src>

<mosaic_0001>
module attributes {stable_mosaic.version = 11 : i64} {
  func.func @_rgat_kernel(%arg0: memref<16x8xf32, #tpu.memory_space<vmem>>, %arg1: memref<120x128xf32, #tpu.memory_space<vmem>>, %arg2: memref<16x64xf32, #tpu.memory_space<vmem>>, %arg3: memref<16x16xf32, #tpu.memory_space<vmem>>) attributes {dimension_semantics = [], scalar_prefetch = 0 : i64, scratch_operands = 0 : i64, tpu.core_type = #tpu.core_type<tc>} {
    %c0 = arith.constant 0 : index
    %c0_0 = arith.constant 0 : index
    %0 = vector.load %arg0[%c0, %c0_0] : memref<16x8xf32, #tpu.memory_space<vmem>>, vector<16x8xf32>
    %c0_1 = arith.constant 0 : index
    %c0_2 = arith.constant 0 : index
    %1 = vector.load %arg1[%c0_1, %c0_2] : memref<120x128xf32, #tpu.memory_space<vmem>>, vector<8x96xf32>
    %c8 = arith.constant 8 : index
    %c0_3 = arith.constant 0 : index
    %2 = vector.load %arg1[%c8, %c0_3] : memref<120x128xf32, #tpu.memory_space<vmem>>, vector<4x8xf32>
    %c16 = arith.constant 16 : index
    %c0_4 = arith.constant 0 : index
    %3 = vector.load %arg1[%c16, %c0_4] : memref<120x128xf32, #tpu.memory_space<vmem>>, vector<4x64xf32>
    %c24 = arith.constant 24 : index
    %c0_5 = arith.constant 0 : index
    %4 = vector.load %arg1[%c24, %c0_5] : memref<120x128xf32, #tpu.memory_space<vmem>>, vector<16x64xf32>
    %c40 = arith.constant 40 : index
    %c0_6 = arith.constant 0 : index
    %5 = vector.load %arg1[%c40, %c0_6] : memref<120x128xf32, #tpu.memory_space<vmem>>, vector<8x16xf32>
    %c48 = arith.constant 48 : index
    %c0_7 = arith.constant 0 : index
    %6 = vector.load %arg1[%c48, %c0_7] : memref<120x128xf32, #tpu.memory_space<vmem>>, vector<64x16xf32>
    %c112 = arith.constant 112 : index
    %c0_8 = arith.constant 0 : index
    %7 = vector.load %arg1[%c112, %c0_8] : memref<120x128xf32, #tpu.memory_space<vmem>>, vector<1x16xf32>
    %cst = arith.constant dense<0.000000e+00> : vector<16x96xf32>
    %8 = tpu.matmul %0, %1, %cst {dimension_numbers = #tpu.dot_dimension_numbers<[1], [0], [0], [1], [0, 0, 1, 1], [], []>} : vector<16x8xf32>, vector<8x96xf32>, vector<16x96xf32> -> vector<16x96xf32>
    %9 = vector.extract_strided_slice %8 {offsets = [0, 0], sizes = [16, 32], strides = [1, 1]} : vector<16x96xf32> to vector<16x32xf32>
    %10 = vector.extract_strided_slice %8 {offsets = [0, 32], sizes = [16, 64], strides = [1, 1]} : vector<16x96xf32> to vector<16x64xf32>
    %cst_9 = arith.constant dense<0.000000e+00> : vector<4x16xf32>
    %11 = tpu.matmul %2, %0, %cst_9 {dimension_numbers = #tpu.dot_dimension_numbers<[1], [1], [0], [0], [0, 0, 1, 0], [], []>} : vector<4x8xf32>, vector<16x8xf32>, vector<4x16xf32> -> vector<4x16xf32>
    %cst_10 = arith.constant dense<0.000000e+00> : vector<4x64xf32>
    %12 = tpu.matmul %11, %4, %cst_10 {dimension_numbers = #tpu.dot_dimension_numbers<[1], [0], [0], [1], [0, 0, 1, 1], [], []>} : vector<4x16xf32>, vector<16x64xf32>, vector<4x64xf32> -> vector<4x64xf32>
    %13 = arith.mulf %12, %3 : vector<4x64xf32>
    %cst_11 = arith.constant dense<0.000000e+00> : vector<64xf32>
    %14 = vector.multi_reduction <add>, %13, %cst_11 [0] : vector<4x64xf32> to vector<64xf32>
    %15 = vector.shape_cast %14 : vector<64xf32> to vector<1x64xf32>
    %16 = vector.broadcast %15 : vector<1x64xf32> to vector<16x64xf32>
    %17 = arith.addf %10, %16 : vector<16x64xf32>
    %cst_12 = arith.constant 2.000000e-01 : f32
    %18 = vector.broadcast %cst_12 : f32 to vector<16x64xf32>
    %19 = arith.mulf %18, %17 : vector<16x64xf32>
    %20 = arith.maximumf %17, %19 : vector<16x64xf32>
    %c0_13 = arith.constant 0 : index
    %c0_14 = arith.constant 0 : index
    %21 = vector.load %arg2[%c0_13, %c0_14] : memref<16x64xf32, #tpu.memory_space<vmem>>, vector<16x64xf32>
    %22 = arith.addf %20, %21 : vector<16x64xf32>
    %cst_15 = arith.constant dense<0xFF800000> : vector<16xf32>
    %23 = vector.multi_reduction <maximumf>, %22, %cst_15 [1] : vector<16x64xf32> to vector<16xf32>
    %24 = vector.shape_cast %23 : vector<16xf32> to vector<16x1xf32>
    %25 = vector.broadcast %24 : vector<16x1xf32> to vector<16x64xf32>
    %26 = arith.subf %22, %25 : vector<16x64xf32>
    %27 = math.exp %26 : vector<16x64xf32>
    %cst_16 = arith.constant dense<0.000000e+00> : vector<16x4xf32>
    %28 = tpu.matmul %27, %3, %cst_16 {dimension_numbers = #tpu.dot_dimension_numbers<[1], [1], [0], [0], [0, 0, 1, 0], [], []>} : vector<16x64xf32>, vector<4x64xf32>, vector<16x4xf32> -> vector<16x4xf32>
    %cst_17 = arith.constant 9.99999968E-21 : f32
    %29 = vector.broadcast %cst_17 : f32 to vector<16x4xf32>
    %30 = arith.maximumf %28, %29 : vector<16x4xf32>
    %31 = tpu.reciprocal %30 {approx = true} : vector<16x4xf32> -> vector<16x4xf32>
    %32 = arith.mulf %30, %31 : vector<16x4xf32>
    %cst_18 = arith.constant 2.000000e+00 : f32
    %33 = vector.broadcast %cst_18 : f32 to vector<16x4xf32>
    %34 = arith.subf %33, %32 : vector<16x4xf32>
    %35 = arith.mulf %31, %34 : vector<16x4xf32>
    %cst_19 = arith.constant dense<0.000000e+00> : vector<16x64xf32>
    %36 = tpu.matmul %35, %3, %cst_19 {dimension_numbers = #tpu.dot_dimension_numbers<[1], [0], [0], [1], [0, 0, 1, 1], [], []>} : vector<16x4xf32>, vector<4x64xf32>, vector<16x64xf32> -> vector<16x64xf32>
    %37 = arith.mulf %27, %36 : vector<16x64xf32>
    %38 = vector.extract_strided_slice %9 {offsets = [0, 0], sizes = [16, 8], strides = [1, 1]} : vector<16x32xf32> to vector<16x8xf32>
    %39 = vector.extract_strided_slice %9 {offsets = [0, 16], sizes = [16, 8], strides = [1, 1]} : vector<16x32xf32> to vector<16x8xf32>
    %40 = vector.extract_strided_slice %9 {offsets = [0, 8], sizes = [16, 8], strides = [1, 1]} : vector<16x32xf32> to vector<16x8xf32>
    %41 = vector.extract_strided_slice %9 {offsets = [0, 24], sizes = [16, 8], strides = [1, 1]} : vector<16x32xf32> to vector<16x8xf32>
    %42 = tpu.concatenate %38, %39, %40, %41 in 0 : vector<16x8xf32>, vector<16x8xf32>, vector<16x8xf32>, vector<16x8xf32> -> vector<64x8xf32>
    %cst_20 = arith.constant dense<0.000000e+00> : vector<64x16xf32>
    %43 = tpu.matmul %42, %5, %cst_20 {dimension_numbers = #tpu.dot_dimension_numbers<[1], [0], [0], [1], [0, 0, 1, 1], [], []>} : vector<64x8xf32>, vector<8x16xf32>, vector<64x16xf32> -> vector<64x16xf32>
    %44 = arith.mulf %43, %6 : vector<64x16xf32>
    %cst_21 = arith.constant dense<0.000000e+00> : vector<16x16xf32>
    %45 = tpu.matmul %37, %44, %cst_21 {dimension_numbers = #tpu.dot_dimension_numbers<[1], [0], [0], [1], [0, 0, 1, 1], [], []>} : vector<16x64xf32>, vector<64x16xf32>, vector<16x16xf32> -> vector<16x16xf32>
    %46 = vector.broadcast %7 : vector<1x16xf32> to vector<16x16xf32>
    %47 = arith.addf %45, %46 : vector<16x16xf32>
    %c0_22 = arith.constant 0 : index
    %c0_23 = arith.constant 0 : index
    %48 = vector.load %arg3[%c0_22, %c0_23] : memref<16x16xf32, #tpu.memory_space<vmem>>, vector<16x16xf32>
    tpu.vector_store %arg3[%c0_22, %c0_23], %47 {strides = array<i32>} : memref<16x16xf32, #tpu.memory_space<vmem>>, vector<16x16xf32>,
    return
  }
}

</mosaic_0001>

<llo_original>
// kernel: rgat_forward.1
$region0: #{rgat_forward.1}
  #allocation0 [shape = 'u32[]', space=smem, size = 0x4, offset = 0x4, fixed_abs, tag = 'smem constant byte address 0x4 - core index']
  #allocation1 [shape = 'u32[144,128]{1,0:T(1,128)}', space=vmem, size = 0x12000, scoped, tag = 'internal scratch']
  %s0 = inlined_call_operand.vmem [shape: f32[16,8], index: 0, kind: input, shape index: {}]
  %s1 = inlined_call_operand.vmem [shape: f32[120,128], index: 1, kind: input, shape index: {}]
  %s2 = inlined_call_operand.vmem [shape: f32[16,64], index: 2, kind: input, shape index: {}]
  %s3 = inlined_call_operand.hbm [shape: f32[16,16], index: 3, kind: output, shape index: {}]
  %s4 = sld [smem:[#allocation0]]
  $region22: #{rgat_forward.1} parent=0
    _
  %s6 = ssub.s32 1, %s4
  %s7 = scalar_select 0, %s6, %s4
  $region1: #{rgat_forward.1} parent=0
    #allocation2 [shape = 'u8[8192]{0}', space=vmem, size = 0x2000, scoped, tag = 'output window, operand 0, single buffered']
    #allocation3 [shape = 's32[1]{0}', space=sflag, size = 0x4, scoped, tag = 'scoped memory for rgat_forward.1']
    %8 = vsyncpa [#allocation3], 0
    // Predicated region
    $region2: #{rgat_forward.1} parent=1 // pred_check
      _
    $region3: #{rgat_forward.1} parent=1 // pred_check_branch
      %10 = sbr.rel (0) target = $region5
    $region4: #{rgat_forward.1} parent=1 // pred_region
      _
    $region5: #{rgat_forward.1} parent=1 // pred_fallthru
      _
    // Predicated region
    $region6: #{rgat_forward.1} parent=1 // pred_check
      _
    $region7: #{rgat_forward.1} parent=1 // pred_check_branch
      %12 = sbr.rel (0) target = $region9
    $region8: #{rgat_forward.1} parent=1 // pred_region
      _
    $region9: #{rgat_forward.1} parent=1 // pred_fallthru
      _
    // Predicated region
    $region10: #{rgat_forward.1} parent=1 // pred_check
      _
    $region11: #{rgat_forward.1} parent=1 // pred_check_branch
      %14 = sbr.rel (0) target = $region13
    $region12: #{rgat_forward.1} parent=1 // pred_region
      _
    $region13: #{rgat_forward.1} parent=1 // pred_fallthru
      _
    %v15 = vld [vmem:[%s0] sm:$0xff]
    %v16 = vld [vmem:[%s0 + $0x8] sm:$0xff]
    %v17 = vld [vmem:[%s1] sm:$0xff]
    %v18 = vld [vmem:[%s1 + $0x8] sm:$0xf]
    %v19 = vld [vmem:[%s1 + $0x10] sm:$0xf]
    %v20 = vld [vmem:[%s1 + $0x18] sm:$0xff]
    %v21 = vld [vmem:[%s1 + $0x20] sm:$0xff]
    %v22 = vld [vmem:[%s1 + $0x28] sm:$0xff]
    %v23 = vld [vmem:[%s1 + $0x30] sm:$0xff]
    %v24 = vld [vmem:[%s1 + $0x38] sm:$0xff]
    %v25 = vld [vmem:[%s1 + $0x40] sm:$0xff]
    %v26 = vld [vmem:[%s1 + $0x48] sm:$0xff]
    %v27 = vld [vmem:[%s1 + $0x50] sm:$0xff]
    %v28 = vld [vmem:[%s1 + $0x58] sm:$0xff]
    %v29 = vld [vmem:[%s1 + $0x60] sm:$0xff]
    %v30 = vld [vmem:[%s1 + $0x68] sm:$0xff]
    %v31 = vld [vmem:[%s1 + $0x70] sm:$0x1]
    %vm32 = vcmask 64512
    %v34 = vsel %vm32, %v15, 0
    %v37 = vsel %vm32, %v16, 0
    %39 = vmatprep.subr.mxu0 0.0
    %40 = vmatpush1.msra.mxu0 %v17
    %41 = vmatprep.subr.mxu0 0.0
    %42 = vmatpush1.msra.mxu0 0.0
    %43 = vmatprep.subr.mxu0 0.0
    %44 = vmatpush1.msra.mxu0 0.0
    %45 = vmatprep.subr.mxu0 0.0
    %46 = vmatpush1.msra.mxu0 0.0
    %47 = vmatprep.subr.mxu0 0.0
    %48 = vmatpush1.msra.mxu0 0.0
    %49 = vmatprep.subr.mxu0 0.0
    %50 = vmatpush1.msra.mxu0 0.0
    %51 = vmatprep.subr.mxu0 0.0
    %52 = vmatpush1.msra.mxu0 0.0
    %53 = vmatprep.subr.mxu0 0.0
    %54 = vmatpush1.msra.mxu0 0.0
    %55 = vmatprep.subr.mxu0 0.0
    %56 = vmatpush1.msra.mxu0 0.0
    %57 = vmatprep.subr.mxu0 0.0
    %58 = vmatpush1.msra.mxu0 0.0
    %59 = vmatprep.subr.mxu0 0.0
    %60 = vmatpush1.msra.mxu0 0.0
    %61 = vmatprep.subr.mxu0 0.0
    %62 = vmatpush1.msra.mxu0 0.0
    %63 = vmatprep.subr.mxu0 0.0
    %64 = vmatpush1.msra.mxu0 0.0
    %65 = vmatprep.subr.mxu0 0.0
    %66 = vmatpush1.msra.mxu0 0.0
    %67 = vmatprep.subr.mxu0 0.0
    %68 = vmatpush1.msra.mxu0 0.0
    %69 = vmatprep.subr.mxu0 0.0
    %70 = vmatpush1.msra.mxu0 0.0
    %71 = vmatprep.subr.mxu0 0.0
    %72 = vmatpush1.msra.mxu0 0.0
    %73 = vmatprep.subr.mxu0 0.0
    %74 = vmatpush1.msra.mxu0 0.0
    %75 = vmatprep.subr.mxu0 0.0
    %76 = vmatpush1.msra.mxu0 0.0
    %77 = vmatprep.subr.mxu0 0.0
    %78 = vmatpush1.msra.mxu0 0.0
    %79 = vmatprep.subr.mxu0 0.0
    %80 = vmatpush1.msra.mxu0 0.0
    %81 = vmatprep.subr.mxu0 0.0
    %82 = vmatpush1.msra.mxu0 0.0
    %83 = vmatprep.subr.mxu0 0.0
    %84 = vmatpush1.msra.mxu0 0.0
    %85 = vmatprep.subr.mxu0 0.0
    %86 = vmatpush1.msra.mxu0 0.0
    %87 = vmatprep.subr.mxu0 0.0
    %88 = vmatpush1.msra.mxu0 0.0
    %89 = vmatprep.subr.mxu0 0.0
    %90 = vmatpush1.msra.mxu0 0.0
    %91 = vmatprep.subr.mxu0 0.0
    %92 = vmatpush1.msra.mxu0 0.0
    %93 = vmatprep.subr.mxu0 0.0
    %94 = vmatpush1.msra.mxu0 0.0
    %95 = vmatprep.subr.mxu0 0.0
    %96 = vmatpush1.msra.mxu0 0.0
    %97 = vmatprep.subr.mxu0 0.0
    %98 = vmatpush1.msra.mxu0 0.0
    %99 = vmatprep.subr.mxu0 0.0
    %100 = vmatpush1.msra.mxu0 0.0
    %101 = vmatprep.subr.mxu0 0.0
    %102 = vmatpush1.msra.mxu0 0.0
    %103 = vmatprep.mubr.f32.mxu0 0.0
    %104 = vmatmul.mubr.f32.gmra.mrb[0].mxu0 %v34
    %v105 = vpop.f32.mrb[0].mxu0
    %v106 = vadd.f32 0.0, %v105
    %v107 = vpop.f32.mrb[0].mxu0
    %108 = vmatprep.mubr.f32.mxu0 0.0
    %109 = vmatmul.mubr.f32.gmra.mrb[0].mxu0 %v37
    %v110 = vpop.f32.mrb[0].mxu0
    %v111 = vadd.f32 0.0, %v110
    %v112 = vpop.f32.mrb[0].mxu0
    %113 = vdwg.mxu0
    %v115 = vsel %vm32, %v18, 0
    %117 = vmatprep.subr.mxu0 0.0
    %118 = vmatpush1.xpose.msra.mxu0 %v34
    %119 = vmatprep.subr.mxu0 0.0
    %120 = vmatpush1.xpose.msra.mxu0 %v37
    %121 = vmatprep.subr.mxu0 0.0
    %122 = vmatpush1.xpose.msra.mxu0 0.0
    %123 = vmatprep.subr.mxu0 0.0
    %124 = vmatpush1.xpose.msra.mxu0 0.0
    %125 = vmatprep.subr.mxu0 0.0
    %126 = vmatpush1.xpose.msra.mxu0 0.0
    %127 = vmatprep.subr.mxu0 0.0
    %128 = vmatpush1.xpose.msra.mxu0 0.0
    %129 = vmatprep.subr.mxu0 0.0
    %130 = vmatpush1.xpose.msra.mxu0 0.0
    %131 = vmatprep.subr.mxu0 0.0
    %132 = vmatpush1.xpose.msra.mxu0 0.0
    %133 = vmatprep.subr.mxu0 0.0
    %134 = vmatpush1.xpose.msra.mxu0 0.0
    %135 = vmatprep.subr.mxu0 0.0
    %136 = vmatpush1.xpose.msra.mxu0 0.0
    %137 = vmatprep.subr.mxu0 0.0
    %138 = vmatpush1.xpose.msra.mxu0 0.0
    %139 = vmatprep.subr.mxu0 0.0
    %140 = vmatpush1.xpose.msra.mxu0 0.0
    %141 = vmatprep.subr.mxu0 0.0
    %142 = vmatpush1.xpose.msra.mxu0 0.0
    %143 = vmatprep.subr.mxu0 0.0
    %144 = vmatpush1.xpose.msra.mxu0 0.0
    %145 = vmatprep.subr.mxu0 0.0
    %146 = vmatpush1.xpose.msra.mxu0 0.0
    %147 = vmatprep.subr.mxu0 0.0
    %148 = vmatpush1.xpose.msra.mxu0 0.0
    %149 = vmatprep.subr.mxu0 0.0
    %150 = vmatpush1.xpose.msra.mxu0 0.0
    %151 = vmatprep.subr.mxu0 0.0
    %152 = vmatpush1.xpose.msra.mxu0 0.0
    %153 = vmatprep.subr.mxu0 0.0
    %154 = vmatpush1.xpose.msra.mxu0 0.0
    %155 = vmatprep.subr.mxu0 0.0
    %156 = vmatpush1.xpose.msra.mxu0 0.0
    %157 = vmatprep.subr.mxu0 0.0
    %158 = vmatpush1.xpose.msra.mxu0 0.0
    %159 = vmatprep.subr.mxu0 0.0
    %160 = vmatpush1.xpose.msra.mxu0 0.0
    %161 = vmatprep.subr.mxu0 0.0
    %162 = vmatpush1.xpose.msra.mxu0 0.0
    %163 = vmatprep.subr.mxu0 0.0
    %164 = vmatpush1.xpose.msra.mxu0 0.0
    %165 = vmatprep.subr.mxu0 0.0
    %166 = vmatpush1.xpose.msra.mxu0 0.0
    %167 = vmatprep.subr.mxu0 0.0
    %168 = vmatpush1.xpose.msra.mxu0 0.0
    %169 = vmatprep.subr.mxu0 0.0
    %170 = vmatpush1.xpose.msra.mxu0 0.0
    %171 = vmatprep.subr.mxu0 0.0
    %172 = vmatpush1.xpose.msra.mxu0 0.0
    %173 = vmatprep.subr.mxu0 0.0
    %174 = vmatpush1.xpose.msra.mxu0 0.0
    %175 = vmatprep.subr.mxu0 0.0
    %176 = vmatpush1.xpose.msra.mxu0 0.0
    %177 = vmatprep.subr.mxu0 0.0
    %178 = vmatpush1.xpose.msra.mxu0 0.0
    %179 = vmatprep.subr.mxu0 0.0
    %180 = vmatpush1.xpose.msra.mxu0 0.0
    %181 = vmatprep.mubr.f32.mxu0 0.0
    %182 = vmatmul.mubr.f32.gmra.mrb[0].mxu0 %v115
    %v183 = vpop.f32.mrb[0].mxu0
    %v184 = vadd.f32 0.0, %v183
    %v185 = vpop.f32.mrb[0].mxu0
    %186 = vdwg.mxu0
    %vm187 = vcmask 130048
    %v189 = vsel %vm187, %v184, 0
    %191 = vmatprep.subr.mxu0 0.0
    %192 = vmatpush1.msra.mxu0 %v20
    %193 = vmatprep.subr.mxu0 0.0
    %194 = vmatpush1.msra.mxu0 %v21
    %195 = vmatprep.subr.mxu0 0.0
    %196 = vmatpush1.msra.mxu0 0.0
    %197 = vmatprep.subr.mxu0 0.0
    %198 = vmatpush1.msra.mxu0 0.0
    %199 = vmatprep.subr.mxu0 0.0
    %200 = vmatpush1.msra.mxu0 0.0
    %201 = vmatprep.subr.mxu0 0.0
    %202 = vmatpush1.msra.mxu0 0.0
    %203 = vmatprep.subr.mxu0 0.0
    %204 = vmatpush1.msra.mxu0 0.0
    %205 = vmatprep.subr.mxu0 0.0
    %206 = vmatpush1.msra.mxu0 0.0
    %207 = vmatprep.subr.mxu0 0.0
    %208 = vmatpush1.msra.mxu0 0.0
    %209 = vmatprep.subr.mxu0 0.0
    %210 = vmatpush1.msra.mxu0 0.0
    %211 = vmatprep.subr.mxu0 0.0
    %212 = vmatpush1.msra.mxu0 0.0
    %213 = vmatprep.subr.mxu0 0.0
    %214 = vmatpush1.msra.mxu0 0.0
    %215 = vmatprep.subr.mxu0 0.0
    %216 = vmatpush1.msra.mxu0 0.0
    %217 = vmatprep.subr.mxu0 0.0
    %218 = vmatpush1.msra.mxu0 0.0
    %219 = vmatprep.subr.mxu0 0.0
    %220 = vmatpush1.msra.mxu0 0.0
    %221 = vmatprep.subr.mxu0 0.0
    %222 = vmatpush1.msra.mxu0 0.0
    %223 = vmatprep.subr.mxu0 0.0
    %224 = vmatpush1.msra.mxu0 0.0
    %225 = vmatprep.subr.mxu0 0.0
    %226 = vmatpush1.msra.mxu0 0.0
    %227 = vmatprep.subr.mxu0 0.0
    %228 = vmatpush1.msra.mxu0 0.0
    %229 = vmatprep.subr.mxu0 0.0
    %230 = vmatpush1.msra.mxu0 0.0
    %231 = vmatprep.subr.mxu0 0.0
    %232 = vmatpush1.msra.mxu0 0.0
    %233 = vmatprep.subr.mxu0 0.0
    %234 = vmatpush1.msra.mxu0 0.0
    %235 = vmatprep.subr.mxu0 0.0
    %236 = vmatpush1.msra.mxu0 0.0
    %237 = vmatprep.subr.mxu0 0.0
    %238 = vmatpush1.msra.mxu0 0.0
    %239 = vmatprep.subr.mxu0 0.0
    %240 = vmatpush1.msra.mxu0 0.0
    %241 = vmatprep.subr.mxu0 0.0
    %242 = vmatpush1.msra.mxu0 0.0
    %243 = vmatprep.subr.mxu0 0.0
    %244 = vmatpush1.msra.mxu0 0.0
    %245 = vmatprep.subr.mxu0 0.0
    %246 = vmatpush1.msra.mxu0 0.0
    %247 = vmatprep.subr.mxu0 0.0
    %248 = vmatpush1.msra.mxu0 0.0
    %249 = vmatprep.subr.mxu0 0.0
    %250 = vmatpush1.msra.mxu0 0.0
    %251 = vmatprep.subr.mxu0 0.0
    %252 = vmatpush1.msra.mxu0 0.0
    %253 = vmatprep.subr.mxu0 0.0
    %254 = vmatpush1.msra.mxu0 0.0
    %255 = vmatprep.mubr.f32.mxu0 0.0
    %256 = vmatmul.mubr.f32.gmra.mrb[0].mxu0 %v189
    %v257 = vpop.f32.mrb[0].mxu0
    %v258 = vadd.f32 0.0, %v257
    %v259 = vpop.f32.mrb[0].mxu0
    %260 = vdwg.mxu0
    %v261 = vmul.f32 %v258, %v19
    %vm262 = vcmask 519168
    %v263 = vsel %vm262, %v261, 0.0
    %v264 = vrot.slane %v263, 4
    %v265 = vadd.f32 %v263, %v264
    %v266 = vrot.slane %v265, 2
    %v267 = vadd.f32 %v265, %v266
    %v268 = vrot.slane %v267, 1
    %v269 = vadd.f32 %v267, %v268
    %271 = vrot.lane.b32.xlu0 %v269, 32
    %v272 = vpop.permute.xlu0 %271
    %v274 = vadd.f32 %v106, %v272
    %v275 = vadd.f32 %v111, %v272
    %v276 = vmul.f32 %v274, 0.2
    %v277 = vmul.f32 %v275, 0.2
    %v278 = vmax.f32 %v274, %v276
    %v279 = vmax.f32 %v275, %v277
    %v280 = vld [vmem:[%s2] sm:$0xff]
    %v281 = vld [vmem:[%s2 + $0x8] sm:$0xff]
    %284 = vrot.lane.b32.xlu0 %v280, 32
    %v285 = vpop.permute.xlu0 %284
    %286 = vrot.lane.b32.xlu0 %v281, 32
    %v287 = vpop.permute.xlu0 %286
    %v290 = vadd.f32 %v278, %v285
    %v291 = vadd.f32 %v279, %v287
    %vm292 = vcmask 785664
    %v293 = vsel %vm292, %v290, -inf
    %294 = vmax.xlane.f32.xlu0 %v293
    %v295 = vpop.xlane.xlu0 %294
    %v296 = vsel %vm292, %v291, -inf
    %297 = vmax.xlane.f32.xlu0 %v296
    %v298 = vpop.xlane.xlu0 %297
    %v299 = vsub.f32 %v290, %v295
    %v300 = vsub.f32 %v291, %v298
    %v301 = vmul.f32 %v299, 1.442695
    %v302 = vpow.pop %v301
    %v303 = vmul.f32 %v300, 1.442695
    %v304 = vpow.pop %v303
    %307 = vrot.lane.b32.xlu0 %v302, 96
    %v308 = vpop.permute.xlu0 %307
    %309 = vrot.lane.b32.xlu0 %v304, 96
    %v310 = vpop.permute.xlu0 %309
    %vm311 = vcmask 523264
    %v312 = vsel %vm311, %v308, 0
    %v314 = vsel %vm311, %v310, 0
    %v317 = vsel %vm311, %v19, 0
    %319 = vmatprep.subr.mxu0 0.0
    %320 = vmatpush1.xpose.msra.mxu0 %v317
    %321 = vmatprep.subr.mxu0 0.0
    %322 = vmatpush1.xpose.msra.mxu0 0.0
    %323 = vmatprep.subr.mxu0 0.0
    %324 = vmatpush1.xpose.msra.mxu0 0.0
    %325 = vmatprep.subr.mxu0 0.0
    %326 = vmatpush1.xpose.msra.mxu0 0.0
    %327 = vmatprep.subr.mxu0 0.0
    %328 = vmatpush1.xpose.msra.mxu0 0.0
    %329 = vmatprep.subr.mxu0 0.0
    %330 = vmatpush1.xpose.msra.mxu0 0.0
    %331 = vmatprep.subr.mxu0 0.0
    %332 = vmatpush1.xpose.msra.mxu0 0.0
    %333 = vmatprep.subr.mxu0 0.0
    %334 = vmatpush1.xpose.msra.mxu0 0.0
    %335 = vmatprep.subr.mxu0 0.0
    %336 = vmatpush1.xpose.msra.mxu0 0.0
    %337 = vmatprep.subr.mxu0 0.0
    %338 = vmatpush1.xpose.msra.mxu0 0.0
    %339 = vmatprep.subr.mxu0 0.0
    %340 = vmatpush1.xpose.msra.mxu0 0.0
    %341 = vmatprep.subr.mxu0 0.0
    %342 = vmatpush1.xpose.msra.mxu0 0.0
    %343 = vmatprep.subr.mxu0 0.0
    %344 = vmatpush1.xpose.msra.mxu0 0.0
    %345 = vmatprep.subr.mxu0 0.0
    %346 = vmatpush1.xpose.msra.mxu0 0.0
    %347 = vmatprep.subr.mxu0 0.0
    %348 = vmatpush1.xpose.msra.mxu0 0.0
    %349 = vmatprep.subr.mxu0 0.0
    %350 = vmatpush1.xpose.msra.mxu0 0.0
    %351 = vmatprep.subr.mxu0 0.0
    %352 = vmatpush1.xpose.msra.mxu0 0.0
    %353 = vmatprep.subr.mxu0 0.0
    %354 = vmatpush1.xpose.msra.mxu0 0.0
    %355 = vmatprep.subr.mxu0 0.0
    %356 = vmatpush1.xpose.msra.mxu0 0.0
    %357 = vmatprep.subr.mxu0 0.0
    %358 = vmatpush1.xpose.msra.mxu0 0.0
    %359 = vmatprep.subr.mxu0 0.0
    %360 = vmatpush1.xpose.msra.mxu0 0.0
    %361 = vmatprep.subr.mxu0 0.0
    %362 = vmatpush1.xpose.msra.mxu0 0.0
    %363 = vmatprep.subr.mxu0 0.0
    %364 = vmatpush1.xpose.msra.mxu0 0.0
    %365 = vmatprep.subr.mxu0 0.0
    %366 = vmatpush1.xpose.msra.mxu0 0.0
    %367 = vmatprep.subr.mxu0 0.0
    %368 = vmatpush1.xpose.msra.mxu0 0.0
    %369 = vmatprep.subr.mxu0 0.0
    %370 = vmatpush1.xpose.msra.mxu0 0.0
    %371 = vmatprep.subr.mxu0 0.0
    %372 = vmatpush1.xpose.msra.mxu0 0.0
    %373 = vmatprep.subr.mxu0 0.0
    %374 = vmatpush1.xpose.msra.mxu0 0.0
    %375 = vmatprep.subr.mxu0 0.0
    %376 = vmatpush1.xpose.msra.mxu0 0.0
    %377 = vmatprep.subr.mxu0 0.0
    %378 = vmatpush1.xpose.msra.mxu0 0.0
    %379 = vmatprep.subr.mxu0 0.0
    %380 = vmatpush1.xpose.msra.mxu0 0.0
    %381 = vmatprep.subr.mxu0 0.0
    %382 = vmatpush1.xpose.msra.mxu0 0.0
    %383 = vmatprep.mubr.f32.mxu0 0.0
    %384 = vmatmul.mubr.f32.gmra.mrb[0].mxu0 %v312
    %v385 = vpop.f32.mrb[0].mxu0
    %v386 = vadd.f32 0.0, %v385
    %v387 = vpop.f32.mrb[0].mxu0
    %388 = vmatprep.mubr.f32.mxu0 0.0
    %389 = vmatmul.mubr.f32.gmra.mrb[0].mxu0 %v314
    %v390 = vpop.f32.mrb[0].mxu0
    %v391 = vadd.f32 0.0, %v390
    %v392 = vpop.f32.mrb[0].mxu0
    %393 = vdwg.mxu0
    %v394 = vmax.f32 %v386, 1e-20
    %v395 = vmax.f32 %v391, 1e-20
    %v396 = vrcp.pop %v394
    %v397 = vrcp.pop %v395
    %v398 = vmul.f32 %v394, %v396
    %v399 = vmul.f32 %v395, %v397
    %v400 = vsub.f32 2.0, %v398
    %v401 = vsub.f32 2.0, %v399
    %v402 = vmul.f32 %v396, %v400
    %v403 = vmul.f32 %v397, %v401
    %vm404 = vcmask 31744
    %v406 = vsel %vm404, %v402, 0
    %v409 = vsel %vm404, %v403, 0
    %vm411 = vcmask 1043456
    %v412 = vsel %vm411, %v19, 0
    %414 = vmatprep.subr.mxu0 0.0
    %415 = vmatpush1.msra.mxu0 %v412
    %416 = vmatprep.subr.mxu0 0.0
    %417 = vmatpush1.msra.mxu0 0.0
    %418 = vmatprep.subr.mxu0 0.0
    %419 = vmatpush1.msra.mxu0 0.0
    %420 = vmatprep.subr.mxu0 0.0
    %421 = vmatpush1.msra.mxu0 0.0
    %422 = vmatprep.subr.mxu0 0.0
    %423 = vmatpush1.msra.mxu0 0.0
    %424 = vmatprep.subr.mxu0 0.0
    %425 = vmatpush1.msra.mxu0 0.0
    %426 = vmatprep.subr.mxu0 0.0
    %427 = vmatpush1.msra.mxu0 0.0
    %428 = vmatprep.subr.mxu0 0.0
    %429 = vmatpush1.msra.mxu0 0.0
    %430 = vmatprep.subr.mxu0 0.0
    %431 = vmatpush1.msra.mxu0 0.0
    %432 = vmatprep.subr.mxu0 0.0
    %433 = vmatpush1.msra.mxu0 0.0
    %434 = vmatprep.subr.mxu0 0.0
    %435 = vmatpush1.msra.mxu0 0.0
    %436 = vmatprep.subr.mxu0 0.0
    %437 = vmatpush1.msra.mxu0 0.0
    %438 = vmatprep.subr.mxu0 0.0
    %439 = vmatpush1.msra.mxu0 0.0
    %440 = vmatprep.subr.mxu0 0.0
    %441 = vmatpush1.msra.mxu0 0.0
    %442 = vmatprep.subr.mxu0 0.0
    %443 = vmatpush1.msra.mxu0 0.0
    %444 = vmatprep.subr.mxu0 0.0
    %445 = vmatpush1.msra.mxu0 0.0
    %446 = vmatprep.subr.mxu0 0.0
    %447 = vmatpush1.msra.mxu0 0.0
    %448 = vmatprep.subr.mxu0 0.0
    %449 = vmatpush1.msra.mxu0 0.0
    %450 = vmatprep.subr.mxu0 0.0
    %451 = vmatpush1.msra.mxu0 0.0
    %452 = vmatprep.subr.mxu0 0.0
    %453 = vmatpush1.msra.mxu0 0.0
    %454 = vmatprep.subr.mxu0 0.0
    %455 = vmatpush1.msra.mxu0 0.0
    %456 = vmatprep.subr.mxu0 0.0
    %457 = vmatpush1.msra.mxu0 0.0
    %458 = vmatprep.subr.mxu0 0.0
    %459 = vmatpush1.msra.mxu0 0.0
    %460 = vmatprep.subr.mxu0 0.0
    %461 = vmatpush1.msra.mxu0 0.0
    %462 = vmatprep.subr.mxu0 0.0
    %463 = vmatpush1.msra.mxu0 0.0
    %464 = vmatprep.subr.mxu0 0.0
    %465 = vmatpush1.msra.mxu0 0.0
    %466 = vmatprep.subr.mxu0 0.0
    %467 = vmatpush1.msra.mxu0 0.0
    %468 = vmatprep.subr.mxu0 0.0
    %469 = vmatpush1.msra.mxu0 0.0
    %470 = vmatprep.subr.mxu0 0.0
    %471 = vmatpush1.msra.mxu0 0.0
    %472 = vmatprep.subr.mxu0 0.0
    %473 = vmatpush1.msra.mxu0 0.0
    %474 = vmatprep.subr.mxu0 0.0
    %475 = vmatpush1.msra.mxu0 0.0
    %476 = vmatprep.subr.mxu0 0.0
    %477 = vmatpush1.msra.mxu0 0.0
    %478 = vmatprep.mubr.f32.mxu0 0.0
    %479 = vmatmul.mubr.f32.gmra.mrb[0].mxu0 %v406
    %v480 = vpop.f32.mrb[0].mxu0
    %v481 = vadd.f32 0.0, %v480
    %v482 = vpop.f32.mrb[0].mxu0
    %483 = vmatprep.mubr.f32.mxu0 0.0
    %484 = vmatmul.mubr.f32.gmra.mrb[0].mxu0 %v409
    %v485 = vpop.f32.mrb[0].mxu0
    %v486 = vadd.f32 0.0, %v485
    %v487 = vpop.f32.mrb[0].mxu0
    %488 = vdwg.mxu0
    %491 = vrot.lane.b32.xlu0 %v481, 32
    %v492 = vpop.permute.xlu0 %491
    %493 = vrot.lane.b32.xlu0 %v486, 32
    %v494 = vpop.permute.xlu0 %493
    %v497 = vmul.f32 %v302, %v492
    %v498 = vmul.f32 %v304, %v494
    %501 = vrot.lane.b32.xlu0 %v106, 112
    %v502 = vpop.permute.xlu0 %501
    %503 = vrot.lane.b32.xlu0 %v111, 112
    %v504 = vpop.permute.xlu0 %503
    %505 = vrot.lane.b32.xlu0 %v106, 120
    %v506 = vpop.permute.xlu0 %505
    %507 = vrot.lane.b32.xlu0 %v111, 120
    %v508 = vpop.permute.xlu0 %507
    %509 = vrot.lane.b32.xlu0 %v106, 104
    %v510 = vpop.permute.xlu0 %509
    %511 = vrot.lane.b32.xlu0 %v111, 104
    %v512 = vpop.permute.xlu0 %511
    %v513 = vsel %vm32, %v106, 0
    %v515 = vsel %vm32, %v111, 0
    %v517 = vsel %vm32, %v502, 0
    %v519 = vsel %vm32, %v504, 0
    %v521 = vsel %vm32, %v506, 0
    %v523 = vsel %vm32, %v508, 0
    %v525 = vsel %vm32, %v510, 0
    %v527 = vsel %vm32, %v512, 0
    %529 = vmatprep.subr.mxu0 0.0
    %530 = vmatpush1.msra.mxu0 %v22
    %531 = vmatprep.subr.mxu0 0.0
    %532 = vmatpush1.msra.mxu0 0.0
    %533 = vmatprep.subr.mxu0 0.0
    %534 = vmatpush1.msra.mxu0 0.0
    %535 = vmatprep.subr.mxu0 0.0
    %536 = vmatpush1.msra.mxu0 0.0
    %537 = vmatprep.subr.mxu0 0.0
    %538 = vmatpush1.msra.mxu0 0.0
    %539 = vmatprep.subr.mxu0 0.0
    %540 = vmatpush1.msra.mxu0 0.0
    %541 = vmatprep.subr.mxu0 0.0
    %542 = vmatpush1.msra.mxu0 0.0
    %543 = vmatprep.subr.mxu0 0.0
    %544 = vmatpush1.msra.mxu0 0.0
    %545 = vmatprep.subr.mxu0 0.0
    %546 = vmatpush1.msra.mxu0 0.0
    %547 = vmatprep.subr.mxu0 0.0
    %548 = vmatpush1.msra.mxu0 0.0
    %549 = vmatprep.subr.mxu0 0.0
    %550 = vmatpush1.msra.mxu0 0.0
    %551 = vmatprep.subr.mxu0 0.0
    %552 = vmatpush1.msra.mxu0 0.0
    %553 = vmatprep.subr.mxu0 0.0
    %554 = vmatpush1.msra.mxu0 0.0
    %555 = vmatprep.subr.mxu0 0.0
    %556 = vmatpush1.msra.mxu0 0.0
    %557 = vmatprep.subr.mxu0 0.0
    %558 = vmatpush1.msra.mxu0 0.0
    %559 = vmatprep.subr.mxu0 0.0
    %560 = vmatpush1.msra.mxu0 0.0
    %561 = vmatprep.subr.mxu0 0.0
    %562 = vmatpush1.msra.mxu0 0.0
    %563 = vmatprep.subr.mxu0 0.0
    %564 = vmatpush1.msra.mxu0 0.0
    %565 = vmatprep.subr.mxu0 0.0
    %566 = vmatpush1.msra.mxu0 0.0
    %567 = vmatprep.subr.mxu0 0.0
    %568 = vmatpush1.msra.mxu0 0.0
    %569 = vmatprep.subr.mxu0 0.0
    %570 = vmatpush1.msra.mxu0 0.0
    %571 = vmatprep.subr.mxu0 0.0
    %572 = vmatpush1.msra.mxu0 0.0
    %573 = vmatprep.subr.mxu0 0.0
    %574 = vmatpush1.msra.mxu0 0.0
    %575 = vmatprep.subr.mxu0 0.0
    %576 = vmatpush1.msra.mxu0 0.0
    %577 = vmatprep.subr.mxu0 0.0
    %578 = vmatpush1.msra.mxu0 0.0
    %579 = vmatprep.subr.mxu0 0.0
    %580 = vmatpush1.msra.mxu0 0.0
    %581 = vmatprep.subr.mxu0 0.0
    %582 = vmatpush1.msra.mxu0 0.0
    %583 = vmatprep.subr.mxu0 0.0
    %584 = vmatpush1.msra.mxu0 0.0
    %585 = vmatprep.subr.mxu0 0.0
    %586 = vmatpush1.msra.mxu0 0.0
    %587 = vmatprep.subr.mxu0 0.0
    %588 = vmatpush1.msra.mxu0 0.0
    %589 = vmatprep.subr.mxu0 0.0
    %590 = vmatpush1.msra.mxu0 0.0
    %591 = vmatprep.subr.mxu0 0.0
    %592 = vmatpush1.msra.mxu0 0.0
    %593 = vmatprep.mubr.f32.mxu0 0.0
    %594 = vmatmul.mubr.f32.gmra.mrb[0].mxu0 %v513
    %v595 = vpop.f32.mrb[0].mxu0
    %v596 = vadd.f32 0.0, %v595
    %v597 = vpop.f32.mrb[0].mxu0
    %598 = vmatprep.mubr.f32.mxu0 0.0
    %599 = vmatmul.mubr.f32.gmra.mrb[0].mxu0 %v515
    %v600 = vpop.f32.mrb[0].mxu0
    %v601 = vadd.f32 0.0, %v600
    %v602 = vpop.f32.mrb[0].mxu0
    %603 = vmatprep.mubr.f32.mxu0 0.0
    %604 = vmatmul.mubr.f32.gmra.mrb[0].mxu0 %v517
    %v605 = vpop.f32.mrb[0].mxu0
    %v606 = vadd.f32 0.0, %v605
    %v607 = vpop.f32.mrb[0].mxu0
    %608 = vmatprep.mubr.f32.mxu0 0.0
    %609 = vmatmul.mubr.f32.gmra.mrb[0].mxu0 %v519
    %v610 = vpop.f32.mrb[0].mxu0
    %v611 = vadd.f32 0.0, %v610
    %v612 = vpop.f32.mrb[0].mxu0
    %613 = vmatprep.mubr.f32.mxu0 0.0
    %614 = vmatmul.mubr.f32.gmra.mrb[0].mxu0 %v521
    %v615 = vpop.f32.mrb[0].mxu0
    %v616 = vadd.f32 0.0, %v615
    %v617 = vpop.f32.mrb[0].mxu0
    %618 = vmatprep.mubr.f32.mxu0 0.0
    %619 = vmatmul.mubr.f32.gmra.mrb[0].mxu0 %v523
    %v620 = vpop.f32.mrb[0].mxu0
    %v621 = vadd.f32 0.0, %v620
    %v622 = vpop.f32.mrb[0].mxu0
    %623 = vmatprep.mubr.f32.mxu0 0.0
    %624 = vmatmul.mubr.f32.gmra.mrb[0].mxu0 %v525
    %v625 = vpop.f32.mrb[0].mxu0
    %v626 = vadd.f32 0.0, %v625
    %v627 = vpop.f32.mrb[0].mxu0
    %628 = vmatprep.mubr.f32.mxu0 0.0
    %629 = vmatmul.mubr.f32.gmra.mrb[0].mxu0 %v527
    %v630 = vpop.f32.mrb[0].mxu0
    %v631 = vadd.f32 0.0, %v630
    %v632 = vpop.f32.mrb[0].mxu0
    %633 = vdwg.mxu0
    %v634 = vmul.f32 %v596, %v23
    %v635 = vmul.f32 %v601, %v24
    %v636 = vmul.f32 %v606, %v25
    %v637 = vmul.f32 %v611, %v26
    %v638 = vmul.f32 %v616, %v27
    %v639 = vmul.f32 %v621, %v28
    %v640 = vmul.f32 %v626, %v29
    %v641 = vmul.f32 %v631, %v30
    %v642 = vlaneseq
    %v643 = vshrl.u32 %v642, 7
    %v644 = vsub.s32 0, %v643
    %v645 = vrot.slane %v31, %v644
    %648 = vrot.lane.b32.xlu0 %v497, 96
    %v649 = vpop.permute.xlu0 %648
    %650 = vrot.lane.b32.xlu0 %v498, 96
    %v651 = vpop.permute.xlu0 %650
    %v652 = vsel %vm311, %v649, 0
    %v654 = vsel %vm311, %v651, 0
    %656 = vmatprep.subr.mxu0 0.0
    %657 = vmatpush1.msra.mxu0 %v634
    %658 = vmatprep.subr.mxu0 0.0
    %659 = vmatpush1.msra.mxu0 %v635
    %660 = vmatprep.subr.mxu0 0.0
    %661 = vmatpush1.msra.mxu0 %v636
    %662 = vmatprep.subr.mxu0 0.0
    %663 = vmatpush1.msra.mxu0 %v637
    %664 = vmatprep.subr.mxu0 0.0
    %665 = vmatpush1.msra.mxu0 %v638
    %666 = vmatprep.subr.mxu0 0.0
    %667 = vmatpush1.msra.mxu0 %v639
    %668 = vmatprep.subr.mxu0 0.0
    %669 = vmatpush1.msra.mxu0 %v640
    %670 = vmatprep.subr.mxu0 0.0
    %671 = vmatpush1.msra.mxu0 %v641
    %672 = vmatprep.subr.mxu0 0.0
    %673 = vmatpush1.msra.mxu0 0.0
    %674 = vmatprep.subr.mxu0 0.0
    %675 = vmatpush1.msra.mxu0 0.0
    %676 = vmatprep.subr.mxu0 0.0
    %677 = vmatpush1.msra.mxu0 0.0
    %678 = vmatprep.subr.mxu0 0.0
    %679 = vmatpush1.msra.mxu0 0.0
    %680 = vmatprep.subr.mxu0 0.0
    %681 = vmatpush1.msra.mxu0 0.0
    %682 = vmatprep.subr.mxu0 0.0
    %683 = vmatpush1.msra.mxu0 0.0
    %684 = vmatprep.subr.mxu0 0.0
    %685 = vmatpush1.msra.mxu0 0.0
    %686 = vmatprep.subr.mxu0 0.0
    %687 = vmatpush1.msra.mxu0 0.0
    %688 = vmatprep.subr.mxu0 0.0
    %689 = vmatpush1.msra.mxu0 0.0
    %690 = vmatprep.subr.mxu0 0.0
    %691 = vmatpush1.msra.mxu0 0.0
    %692 = vmatprep.subr.mxu0 0.0
    %693 = vmatpush1.msra.mxu0 0.0
    %694 = vmatprep.subr.mxu0 0.0
    %695 = vmatpush1.msra.mxu0 0.0
    %696 = vmatprep.subr.mxu0 0.0
    %697 = vmatpush1.msra.mxu0 0.0
    %698 = vmatprep.subr.mxu0 0.0
    %699 = vmatpush1.msra.mxu0 0.0
    %700 = vmatprep.subr.mxu0 0.0
    %701 = vmatpush1.msra.mxu0 0.0
    %702 = vmatprep.subr.mxu0 0.0
    %703 = vmatpush1.msra.mxu0 0.0
    %704 = vmatprep.subr.mxu0 0.0
    %705 = vmatpush1.msra.mxu0 0.0
    %706 = vmatprep.subr.mxu0 0.0
    %707 = vmatpush1.msra.mxu0 0.0
    %708 = vmatprep.subr.mxu0 0.0
    %709 = vmatpush1.msra.mxu0 0.0
    %710 = vmatprep.subr.mxu0 0.0
    %711 = vmatpush1.msra.mxu0 0.0
    %712 = vmatprep.subr.mxu0 0.0
    %713 = vmatpush1.msra.mxu0 0.0
    %714 = vmatprep.subr.mxu0 0.0
    %715 = vmatpush1.msra.mxu0 0.0
    %716 = vmatprep.subr.mxu0 0.0
    %717 = vmatpush1.msra.mxu0 0.0
    %718 = vmatprep.subr.mxu0 0.0
    %719 = vmatpush1.msra.mxu0 0.0
    %720 = vmatprep.mubr.f32.mxu0 0.0
    %721 = vmatmul.mubr.f32.gmra.mrb[0].mxu0 %v652
    %v722 = vpop.f32.mrb[0].mxu0
    %v723 = vadd.f32 %v645, %v722
    %v724 = vpop.f32.mrb[0].mxu0
    %725 = vmatprep.mubr.f32.mxu0 0.0
    %726 = vmatmul.mubr.f32.gmra.mrb[0].mxu0 %v654
    %v727 = vpop.f32.mrb[0].mxu0
    %v728 = vadd.f32 %v645, %v727
    %v729 = vpop.f32.mrb[0].mxu0
    %730 = vdwg.mxu0
    %731 = vst.msk [vmem:[#allocation2] sm:$0xff] %vm187, %v723
    %732 = vst.msk [vmem:[#allocation2 + $0x8] sm:$0xff] %vm187, %v728
    // Predicated region
    $region14: #{rgat_forward.1} parent=1 // pred_check
      _
    $region15: #{rgat_forward.1} parent=1 // pred_check_branch
      %734 = sbr.rel (0) target = $region17
    $region16: #{rgat_forward.1} parent=1 // pred_region
      %s736 = ssub.s32 256, 256
      %737 = vsyncadd [#allocation3], %s736
      %s738 = sshll.u32 [#allocation2], 4
      %s739 = int_to_ptr.vmem [resolvable:$true] %s738
      %744 = dma.vmem_to_hbm [thread:$0]  %s739, 256, %s3, [#allocation3], 128, 128, 8
    $region17: #{rgat_forward.1} parent=1 // pred_fallthru
      _
    // Predicated region
    $region18: #{rgat_forward.1} parent=1 // pred_check
      _
    $region19: #{rgat_forward.1} parent=1 // pred_check_branch
      %746 = sbr.rel (0) target = $region21
    $region20: #{rgat_forward.1} parent=1 // pred_region
      %747 = dma.done [#allocation3], 256
    $region21: #{rgat_forward.1} parent=1 // pred_fallthru
      _
    %748 = vsyncpa [#allocation3], 1

</llo_original>
